<compile_context>
chip_gen: v6e
topology: v6e:2x2x1
jax: 0.10.0
libtpu: 0.0.40
codegen_flags: <defaults>
</compile_context>

<pallas_src>
import numpy as np
import jax
import jax.numpy as jnp
from jax.experimental import pallas as pl
from jax.experimental.pallas import tpu as pltpu

_VMEM_LIMIT_CACHE = None


def _vmem_limit_bytes():
    """Generation-aware scoped-VMEM budget (~half of physical VMEM, capped)."""
    global _VMEM_LIMIT_CACHE
    if _VMEM_LIMIT_CACHE is None:
        limit = 32 * 1024 * 1024  # safe fallback (fits v7x's 64 MiB physical)
        try:
            cap = int(pltpu.get_tpu_info().vmem_capacity_bytes)
            if cap > 0:
                limit = int(min(cap // 2, 96 * 1024 * 1024))
        except Exception:
            pass
        _VMEM_LIMIT_CACHE = limit
    return _VMEM_LIMIT_CACHE


def _layernorm_affine(y, g, b):
    """Two-pass LayerNorm (f32, eps=1e-5) followed by affine gamma/beta."""
    mu = jnp.mean(y, axis=-1, keepdims=True)
    d = y - mu
    var = jnp.mean(d * d, axis=-1, keepdims=True)
    return d * jax.lax.rsqrt(var + 1e-5) * g + b


# --------------------------------------------------------------------------
# Kernel 1 (edge path): fused concat (split-w1) + MLP + LayerNorm + residual.
# Operates on (TM, C) row tiles of the flattened (B*E, C) slabs.
# --------------------------------------------------------------------------
def _edge_mlp_kernel(src_ref, dst_ref, e_ref,
                     w1s_ref, w1d_ref, w1e_ref, w2_ref, g_ref, b_ref, o_ref):
    e_f32 = e_ref[...]                                               # (TM, Ce) f32
    # h = [src|dst|edge] @ w1  (concat fused via row-split of w1), bf16 operands
    h = jnp.dot(src_ref[...], w1s_ref[...], preferred_element_type=jnp.float32)
    h = h + jnp.dot(dst_ref[...], w1d_ref[...], preferred_element_type=jnp.float32)
    h = h + jnp.dot(e_f32.astype(jnp.bfloat16), w1e_ref[...],
                    preferred_element_type=jnp.float32)
    h = h * jax.nn.sigmoid(h)                                        # SiLU (f32)
    y = jnp.dot(h.astype(jnp.bfloat16), w2_ref[...],
                preferred_element_type=jnp.float32)
    # LayerNorm + fused residual (edge_out == edge_in required by module)
    o_ref[...] = _layernorm_affine(y, g_ref[...], b_ref[...]) + e_f32


def edge_mlp_fused(src_f2, dst_f2, edge2, w1_splits, w2, gamma, beta, tm=4096):
    M, Cn = src_f2.shape
    Ce = edge2.shape[1]
    w1s, w1d, w1e = w1_splits
    L = w1s.shape[1]
    Cout = w2.shape[1]
    tm_eff = M if M <= tm else tm          # full-dim block or large row tile
    grid = (pl.cdiv(M, tm_eff),)
    return pl.pallas_call(
        _edge_mlp_kernel,
        out_shape=jax.ShapeDtypeStruct((M, Cout), jnp.float32),
        grid_spec=pltpu.PrefetchScalarGridSpec(
            num_scalar_prefetch=0,
            grid=grid,
            in_specs=[
                pl.BlockSpec((tm_eff, Cn), lambda i: (i, 0)),
                pl.BlockSpec((tm_eff, Cn), lambda i: (i, 0)),
                pl.BlockSpec((tm_eff, Ce), lambda i: (i, 0)),
                pl.BlockSpec((Cn, L), lambda i: (0, 0)),
                pl.BlockSpec((Cn, L), lambda i: (0, 0)),
                pl.BlockSpec((Ce, L), lambda i: (0, 0)),
                pl.BlockSpec((L, Cout), lambda i: (0, 0)),
                pl.BlockSpec((1, Cout), lambda i: (0, 0)),
                pl.BlockSpec((1, Cout), lambda i: (0, 0)),
            ],
            out_specs=pl.BlockSpec((tm_eff, Cout), lambda i: (i, 0)),
        ),
        compiler_params=pltpu.CompilerParams(
            dimension_semantics=("parallel",),
            vmem_limit_bytes=_vmem_limit_bytes()),
    )(src_f2, dst_f2, edge2, w1s, w1d, w1e, w2, gamma, beta)


# --------------------------------------------------------------------------
# Kernel 2 (node path): fused scatter-sum (one-hot MXU matmul over EDGE CHUNKS,
# accumulated in VMEM scratch) + concat (split-w1) + MLP + LayerNorm + residual.
# Grid = (batch, node-row tiles, edge chunks), edge chunks innermost (reduction).
# --------------------------------------------------------------------------
def _node_mlp_scatter_kernel(dst_idx_ref, dstn_ref, edge_ref,
                             w1n_ref, w1e_ref, w2_ref, g_ref, b_ref,
                             o_ref, acc_ref):
    tn = dstn_ref.shape[1]
    te = edge_ref.shape[1]
    k = pl.program_id(2)

    @pl.when(k == 0)
    def _():
        acc_ref[...] = jnp.zeros_like(acc_ref)

    # one-hot for this edge chunk: onehot[r, e] = (node_id(r) == dst_idx[e]).
    # Padded edges carry dst_idx == -1 (never matches) and zero features.
    base = pl.program_id(1) * tn
    node_ids = jax.lax.broadcasted_iota(jnp.int32, (tn, te), 0) + base
    onehot = (node_ids == dst_idx_ref[...]).astype(jnp.bfloat16)     # (tn, te)

    # scatter-sum as MXU matmul (bf16 operands, f32 accumulation in scratch)
    acc_ref[...] += jnp.dot(onehot, edge_ref[0],
                            preferred_element_type=jnp.float32)      # (tn, Ce)

    @pl.when(k == pl.num_programs(2) - 1)
    def _():
        x_f32 = dstn_ref[0]                                          # (tn, Cn) f32
        # h = [dst_node | sum_edge] @ w1  (concat fused via row-split of w1)
        h = jnp.dot(x_f32.astype(jnp.bfloat16), w1n_ref[...],
                    preferred_element_type=jnp.float32)
        h = h + jnp.dot(acc_ref[...].astype(jnp.bfloat16), w1e_ref[...],
                        preferred_element_type=jnp.float32)
        h = h * jax.nn.sigmoid(h)                                    # SiLU (f32)
        y = jnp.dot(h.astype(jnp.bfloat16), w2_ref[...],
                    preferred_element_type=jnp.float32)
        # LayerNorm + fused residual (node_out == node_in required by module)
        o_ref[0] = _layernorm_affine(y, g_ref[...], b_ref[...]) + x_f32


def node_mlp_scatter_fused(dst_node, edge_bf16, dst_idx_2d, w1_splits, w2,
                           gamma, beta, tn=1024, te=512):
    B, Nd, Cn = dst_node.shape
    _, E, Ce = edge_bf16.shape
    w1n, w1e = w1_splits
    L = w1n.shape[1]
    Cout = w2.shape[1]

    tn_eff = Nd if Nd <= tn else tn
    te_eff = E if E <= te else te
    n_k = pl.cdiv(E, te_eff)
    e_pad = n_k * te_eff
    if e_pad != E:
        # pad edge feats with zeros and dst indices with -1 so the tail chunk
        # contributes exactly nothing (no garbage reads, no NaN poisoning).
        edge_bf16 = jnp.pad(edge_bf16, ((0, 0), (0, e_pad - E), (0, 0)))
        dst_idx_2d = jnp.pad(dst_idx_2d, ((0, 0), (0, e_pad - E)),
                             constant_values=-1)

    grid = (B, pl.cdiv(Nd, tn_eff), n_k)
    return pl.pallas_call(
        _node_mlp_scatter_kernel,
        out_shape=jax.ShapeDtypeStruct((B, Nd, Cout), jnp.float32),
        grid_spec=pltpu.PrefetchScalarGridSpec(
            num_scalar_prefetch=0,
            grid=grid,
            in_specs=[
                pl.BlockSpec((1, te_eff), lambda b, i, k: (0, k)),           # dst_idx
                pl.BlockSpec((1, tn_eff, Cn), lambda b, i, k: (b, i, 0)),    # dst nodes (f32)
                pl.BlockSpec((1, te_eff, Ce), lambda b, i, k: (b, k, 0)),    # edge chunk (bf16)
                pl.BlockSpec((Cn, L), lambda b, i, k: (0, 0)),
                pl.BlockSpec((Ce, L), lambda b, i, k: (0, 0)),
                pl.BlockSpec((L, Cout), lambda b, i, k: (0, 0)),
                pl.BlockSpec((1, Cout), lambda b, i, k: (0, 0)),
                pl.BlockSpec((1, Cout), lambda b, i, k: (0, 0)),
            ],
            out_specs=pl.BlockSpec((1, tn_eff, Cout), lambda b, i, k: (b, i, 0)),
            scratch_shapes=[pltpu.VMEM((tn_eff, Ce), jnp.float32)],
        ),
        compiler_params=pltpu.CompilerParams(
            # Only the batch axis is "parallel": on v7x the two TensorCores then
            # take different batches instead of both re-DMAing the same edge chunk.
            dimension_semantics=("parallel", "arbitrary", "arbitrary"),
            vmem_limit_bytes=_vmem_limit_bytes()),
    )(dst_idx_2d, dst_node, edge_bf16, w1n, w1e, w2, gamma, beta)


# --------------------------------------------------------------------------
# InteractionLayer (is_homo=False) wrapper
# --------------------------------------------------------------------------
def make_mlp_params(key, c_in, c_out, latent):
    k1, k2, k3, k4 = jax.random.split(key, 4)
    w1 = jax.random.normal(k1, (c_in, latent), jnp.float32) / np.sqrt(c_in)
    w2 = jax.random.normal(k2, (latent, c_out), jnp.float32) / np.sqrt(latent)
    gamma = 1.0 + 0.1 * jax.random.normal(k3, (c_out,), jnp.float32)
    beta = 0.1 * jax.random.normal(k4, (c_out,), jnp.float32)
    return w1, w2, gamma, beta


class InteractionLayerPallas:
    def __init__(self, node_in, node_out, edge_in, edge_out, latent,
                 src_idx, dst_idx, key):
        # residual adds in the module require matching channel counts
        assert node_in == node_out and edge_in == edge_out
        ke, kn = jax.random.split(key)

        # edge_fn: in = 2*node_in + edge_in -> split w1 as [src | dst | edge]
        w1_e, w2_e, g_e, b_e = make_mlp_params(ke, 2 * node_in + edge_in, edge_out, latent)
        self.edge_w1_splits = (w1_e[:node_in].astype(jnp.bfloat16),
                               w1_e[node_in:2 * node_in].astype(jnp.bfloat16),
                               w1_e[2 * node_in:].astype(jnp.bfloat16))
        self.edge_w2 = w2_e.astype(jnp.bfloat16)
        self.edge_g = g_e.reshape(1, -1)
        self.edge_b = b_e.reshape(1, -1)

        # node_fn: in = node_in + edge_out -> split w1 as [dst_node | sum_edge]
        w1_n, w2_n, g_n, b_n = make_mlp_params(kn, node_in + edge_out, node_out, latent)
        self.node_w1_splits = (w1_n[:node_in].astype(jnp.bfloat16),
                               w1_n[node_in:].astype(jnp.bfloat16))
        self.node_w2 = w2_n.astype(jnp.bfloat16)
        self.node_g = g_n.reshape(1, -1)
        self.node_b = b_n.reshape(1, -1)

        self.src_idx = src_idx
        self.dst_idx = dst_idx
        self.dst_idx_2d = dst_idx.reshape(1, -1).astype(jnp.int32)

    def __call__(self, feats):
        src_node, dst_node, edge = feats            # (B,Ns,Cn), (B,Nd,Cn), (B,E,Ce)
        B, E, Ce = edge.shape
        Cn = dst_node.shape[2]

        # gathers (torch.index_select) stay as XLA index plumbing; the gathered
        # copies are only MXU operands in the kernel, so cast them to bf16
        # (halves the kernel's HBM read of these streams).
        src_f = jnp.take(src_node, self.src_idx, axis=1).astype(jnp.bfloat16)
        dst_f = jnp.take(dst_node, self.dst_idx, axis=1).astype(jnp.bfloat16)

        # edge path: fused concat/MLP/LN/residual kernel on flattened rows
        # (edge stays f32 here because it is also the residual).
        upd_edge = edge_mlp_fused(
            src_f.reshape(B * E, Cn), dst_f.reshape(B * E, Cn),
            edge.reshape(B * E, Ce),
            self.edge_w1_splits, self.edge_w2, self.edge_g, self.edge_b)
        upd_edge = upd_edge.reshape(B, E, -1)

        # node path: the edge slab only enters a bf16 MXU matmul -> feed bf16.
        upd_node = node_mlp_scatter_fused(
            dst_node, edge.astype(jnp.bfloat16), self.dst_idx_2d,
            self.node_w1_splits, self.node_w2, self.node_g, self.node_b)

        return upd_node, upd_edge


# --------------------------------------------------------------------------
# Pure-JAX reference (mirrors the kernels' bf16 matmul operands, f32 accum/LN)
# --------------------------------------------------------------------------
def _ref_mlp(parts, w1_list, w2, g, b, residual):
    bf16 = jnp.bfloat16
    h = sum(jnp.dot(p.astype(bf16), w1, preferred_element_type=jnp.float32)
            for p, w1 in zip(parts, w1_list))
    h = h * jax.nn.sigmoid(h)
    y = jnp.dot(h.astype(bf16), w2, preferred_element_type=jnp.float32)
    mu = y.mean(-1, keepdims=True)
    d = y - mu
    var = (d * d).mean(-1, keepdims=True)
    return d * jax.lax.rsqrt(var + 1e-5) * g + b + residual


def ref_forward(layer, feats):
    src_node, dst_node, edge = feats
    Nd = dst_node.shape[1]
    src_f = jnp.take(src_node, layer.src_idx, axis=1)
    dst_f = jnp.take(dst_node, layer.dst_idx, axis=1)

    out_edge = _ref_mlp([src_f, dst_f, edge], layer.edge_w1_splits,
                        layer.edge_w2, layer.edge_g, layer.edge_b, edge)

    # scatter-sum of edge feats onto dst nodes (mirror the in-kernel bf16
    # one-hot matmul: products are bf16(edge), accumulated in f32)
    edge_q = edge.astype(jnp.bfloat16).astype(jnp.float32)
    sum_edge = jax.vmap(lambda e: jax.ops.segment_sum(e, layer.dst_idx, Nd))(edge_q)

    out_node = _ref_mlp([dst_node, sum_edge], layer.node_w1_splits,
                        layer.node_w2, layer.node_g, layer.node_b, dst_node)
    return out_node, out_edge


if __name__ == "__main__":
    key = jax.random.PRNGKey(0)
    k_src, k_dst, k_edge, k_si, k_di, k_w = jax.random.split(key, 6)

    B = 2
    N_SRC, N_DST = 16, 16
    E = 24
    NODE_C = 32        # node_in == node_out (required by the residual add)
    EDGE_C = 32        # edge_in == edge_out (required by the residual add)
    LATENT = 64

    src_node = jax.random.normal(k_src, (B, N_SRC, NODE_C), jnp.float32)
    dst_node = jax.random.normal(k_dst, (B, N_DST, NODE_C), jnp.float32)
    edge = jax.random.normal(k_edge, (B, E, EDGE_C), jnp.float32)
    src_idx = jax.random.randint(k_si, (E,), 0, N_SRC, jnp.int32)
    dst_idx = jax.random.randint(k_di, (E,), 0, N_DST, jnp.int32)

    layer = InteractionLayerPallas(NODE_C, NODE_C, EDGE_C, EDGE_C, LATENT,
                                   src_idx, dst_idx, k_w)

    feats = (src_node, dst_node, edge)
    out_nodes, out_edges = layer(feats)
    jax.block_until_ready((out_nodes, out_edges))

    ref_nodes, ref_edges = ref_forward(layer, feats)
    np.testing.assert_allclose(np.asarray(out_nodes), np.asarray(ref_nodes),
                               rtol=2e-2, atol=2e-2)
    np.testing.assert_allclose(np.asarray(out_edges), np.asarray(ref_edges),
                               rtol=2e-2, atol=2e-2)

    print("KERNEL_OK")
</pallas_src>

<mosaic_0001>
module attributes {stable_mosaic.version = 11 : i64} {
  func.func @_edge_mlp_kernel(%arg0: i32, %arg1: memref<48x32xbf16, #tpu.memory_space<vmem>>, %arg2: memref<48x32xbf16, #tpu.memory_space<vmem>>, %arg3: memref<48x32xf32, #tpu.memory_space<vmem>>, %arg4: memref<32x64xbf16, #tpu.memory_space<vmem>>, %arg5: memref<32x64xbf16, #tpu.memory_space<vmem>>, %arg6: memref<32x64xbf16, #tpu.memory_space<vmem>>, %arg7: memref<64x32xbf16, #tpu.memory_space<vmem>>, %arg8: memref<1x32xf32, #tpu.memory_space<vmem>>, %arg9: memref<1x32xf32, #tpu.memory_space<vmem>>, %arg10: memref<48x32xf32, #tpu.memory_space<vmem>>) attributes {dimension_semantics = [#tpu.dimension_semantics<parallel>], iteration_bounds = array<i64: 1>, scalar_prefetch = 0 : i64, scratch_operands = 0 : i64, tpu.core_type = #tpu.core_type<tc>, window_params = [{transform_indices = @transform_0, window_bounds = array<i64: 48, 32>}, {transform_indices = @transform_1, window_bounds = array<i64: 48, 32>}, {transform_indices = @transform_2, window_bounds = array<i64: 48, 32>}, {pipeline_mode = #tpu.pipeline_mode<synchronous>, transform_indices = @transform_3, window_bounds = array<i64: 32, 64>}, {pipeline_mode = #tpu.pipeline_mode<synchronous>, transform_indices = @transform_4, window_bounds = array<i64: 32, 64>}, {pipeline_mode = #tpu.pipeline_mode<synchronous>, transform_indices = @transform_5, window_bounds = array<i64: 32, 64>}, {pipeline_mode = #tpu.pipeline_mode<synchronous>, transform_indices = @transform_6, window_bounds = array<i64: 64, 32>}, {pipeline_mode = #tpu.pipeline_mode<synchronous>, transform_indices = @transform_7, window_bounds = array<i64: 1, 32>}, {pipeline_mode = #tpu.pipeline_mode<synchronous>, transform_indices = @transform_8, window_bounds = array<i64: 1, 32>}, {transform_indices = @transform_9, window_bounds = array<i64: 48, 32>}]} {
    %c0 = arith.constant 0 : index
    %c0_0 = arith.constant 0 : index
    %0 = vector.load %arg3[%c0, %c0_0] : memref<48x32xf32, #tpu.memory_space<vmem>>, vector<48x32xf32>
    %c0_1 = arith.constant 0 : index
    %c0_2 = arith.constant 0 : index
    %1 = vector.load %arg1[%c0_1, %c0_2] : memref<48x32xbf16, #tpu.memory_space<vmem>>, vector<48x32xbf16>
    %c0_3 = arith.constant 0 : index
    %c0_4 = arith.constant 0 : index
    %2 = vector.load %arg4[%c0_3, %c0_4] : memref<32x64xbf16, #tpu.memory_space<vmem>>, vector<32x64xbf16>
    %cst = arith.constant dense<0.000000e+00> : vector<48x64xf32>
    %3 = tpu.matmul %1, %2, %cst {dimension_numbers = #tpu.dot_dimension_numbers<[1], [0], [0], [1], [0, 0, 1, 1], [], []>} : vector<48x32xbf16>, vector<32x64xbf16>, vector<48x64xf32> -> vector<48x64xf32>
    %c0_5 = arith.constant 0 : index
    %c0_6 = arith.constant 0 : index
    %4 = vector.load %arg2[%c0_5, %c0_6] : memref<48x32xbf16, #tpu.memory_space<vmem>>, vector<48x32xbf16>
    %c0_7 = arith.constant 0 : index
    %c0_8 = arith.constant 0 : index
    %5 = vector.load %arg5[%c0_7, %c0_8] : memref<32x64xbf16, #tpu.memory_space<vmem>>, vector<32x64xbf16>
    %cst_9 = arith.constant dense<0.000000e+00> : vector<48x64xf32>
    %6 = tpu.matmul %4, %5, %cst_9 {dimension_numbers = #tpu.dot_dimension_numbers<[1], [0], [0], [1], [0, 0, 1, 1], [], []>} : vector<48x32xbf16>, vector<32x64xbf16>, vector<48x64xf32> -> vector<48x64xf32>
    %7 = arith.addf %3, %6 : vector<48x64xf32>
    %8 = arith.truncf %0 : vector<48x32xf32> to vector<48x32xbf16>
    %c0_10 = arith.constant 0 : index
    %c0_11 = arith.constant 0 : index
    %9 = vector.load %arg6[%c0_10, %c0_11] : memref<32x64xbf16, #tpu.memory_space<vmem>>, vector<32x64xbf16>
    %cst_12 = arith.constant dense<0.000000e+00> : vector<48x64xf32>
    %10 = tpu.matmul %8, %9, %cst_12 {dimension_numbers = #tpu.dot_dimension_numbers<[1], [0], [0], [1], [0, 0, 1, 1], [], []>} : vector<48x32xbf16>, vector<32x64xbf16>, vector<48x64xf32> -> vector<48x64xf32>
    %11 = arith.addf %7, %10 : vector<48x64xf32>
    %12 = arith.negf %11 : vector<48x64xf32>
    %13 = math.exp %12 : vector<48x64xf32>
    %cst_13 = arith.constant 1.000000e+00 : f32
    %14 = vector.broadcast %cst_13 : f32 to vector<48x64xf32>
    %15 = arith.addf %14, %13 : vector<48x64xf32>
    %16 = arith.divf %14, %15 : vector<48x64xf32>
    %17 = arith.mulf %11, %16 : vector<48x64xf32>
    %18 = arith.truncf %17 : vector<48x64xf32> to vector<48x64xbf16>
    %c0_14 = arith.constant 0 : index
    %c0_15 = arith.constant 0 : index
    %19 = vector.load %arg7[%c0_14, %c0_15] : memref<64x32xbf16, #tpu.memory_space<vmem>>, vector<64x32xbf16>
    %cst_16 = arith.constant dense<0.000000e+00> : vector<48x32xf32>
    %20 = tpu.matmul %18, %19, %cst_16 {dimension_numbers = #tpu.dot_dimension_numbers<[1], [0], [0], [1], [0, 0, 1, 1], [], []>} : vector<48x64xbf16>, vector<64x32xbf16>, vector<48x32xf32> -> vector<48x32xf32>
    %c0_17 = arith.constant 0 : index
    %c0_18 = arith.constant 0 : index
    %21 = vector.load %arg8[%c0_17, %c0_18] : memref<1x32xf32, #tpu.memory_space<vmem>>, vector<1x32xf32>
    %c0_19 = arith.constant 0 : index
    %c0_20 = arith.constant 0 : index
    %22 = vector.load %arg9[%c0_19, %c0_20] : memref<1x32xf32, #tpu.memory_space<vmem>>, vector<1x32xf32>
    %cst_21 = arith.constant dense<0.000000e+00> : vector<48xf32>
    %23 = vector.multi_reduction <add>, %20, %cst_21 [1] : vector<48x32xf32> to vector<48xf32>
    %24 = vector.shape_cast %23 : vector<48xf32> to vector<48x1xf32>
    %cst_22 = arith.constant 3.200000e+01 : f32
    %25 = vector.broadcast %cst_22 : f32 to vector<48x1xf32>
    %26 = arith.divf %24, %25 : vector<48x1xf32>
    %27 = vector.broadcast %26 : vector<48x1xf32> to vector<48x32xf32>
    %28 = arith.subf %20, %27 : vector<48x32xf32>
    %29 = arith.mulf %28, %28 : vector<48x32xf32>
    %cst_23 = arith.constant dense<0.000000e+00> : vector<48xf32>
    %30 = vector.multi_reduction <add>, %29, %cst_23 [1] : vector<48x32xf32> to vector<48xf32>
    %31 = vector.shape_cast %30 : vector<48xf32> to vector<48x1xf32>
    %cst_24 = arith.constant 3.200000e+01 : f32
    %32 = vector.broadcast %cst_24 : f32 to vector<48x1xf32>
    %33 = arith.divf %31, %32 : vector<48x1xf32>
    %cst_25 = arith.constant 9.99999974E-6 : f32
    %34 = vector.broadcast %cst_25 : f32 to vector<48x1xf32>
    %35 = arith.addf %33, %34 : vector<48x1xf32>
    %36 = math.rsqrt %35 : vector<48x1xf32>
    %37 = vector.broadcast %36 : vector<48x1xf32> to vector<48x32xf32>
    %38 = arith.mulf %28, %37 : vector<48x32xf32>
    %39 = vector.broadcast %21 : vector<1x32xf32> to vector<48x32xf32>
    %40 = arith.mulf %38, %39 : vector<48x32xf32>
    %41 = vector.broadcast %22 : vector<1x32xf32> to vector<48x32xf32>
    %42 = arith.addf %40, %41 : vector<48x32xf32>
    %43 = arith.addf %42, %0 : vector<48x32xf32>
    %c0_26 = arith.constant 0 : index
    %c0_27 = arith.constant 0 : index
    %44 = vector.load %arg10[%c0_26, %c0_27] : memref<48x32xf32, #tpu.memory_space<vmem>>, vector<48x32xf32>
    tpu.vector_store %arg10[%c0_26, %c0_27], %43 {strides = array<i32>} : memref<48x32xf32, #tpu.memory_space<vmem>>, vector<48x32xf32>,
    return
  }
  func.func @transform_0(%arg0: i32) -> (i32, i32) {
    %c0_i32 = arith.constant 0 : i32
    %c0_i32_0 = arith.constant 0 : i32
    return %arg0, %c0_i32 : i32, i32
  }
  func.func @transform_1(%arg0: i32) -> (i32, i32) {
    %c0_i32 = arith.constant 0 : i32
    %c0_i32_0 = arith.constant 0 : i32
    return %arg0, %c0_i32 : i32, i32
  }
  func.func @transform_2(%arg0: i32) -> (i32, i32) {
    %c0_i32 = arith.constant 0 : i32
    %c0_i32_0 = arith.constant 0 : i32
    return %arg0, %c0_i32 : i32, i32
  }
  func.func @transform_3(%arg0: i32) -> (i32, i32) {
    %c0_i32 = arith.constant 0 : i32
    %c0_i32_0 = arith.constant 0 : i32
    %c0_i32_1 = arith.constant 0 : i32
    return %c0_i32, %c0_i32_0 : i32, i32
  }
  func.func @transform_4(%arg0: i32) -> (i32, i32) {
    %c0_i32 = arith.constant 0 : i32
    %c0_i32_0 = arith.constant 0 : i32
    %c0_i32_1 = arith.constant 0 : i32
    return %c0_i32, %c0_i32_0 : i32, i32
  }
  func.func @transform_5(%arg0: i32) -> (i32, i32) {
    %c0_i32 = arith.constant 0 : i32
    %c0_i32_0 = arith.constant 0 : i32
    %c0_i32_1 = arith.constant 0 : i32
    return %c0_i32, %c0_i32_0 : i32, i32
  }
  func.func @transform_6(%arg0: i32) -> (i32, i32) {
    %c0_i32 = arith.constant 0 : i32
    %c0_i32_0 = arith.constant 0 : i32
    %c0_i32_1 = arith.constant 0 : i32
    return %c0_i32, %c0_i32_0 : i32, i32
  }
  func.func @transform_7(%arg0: i32) -> (i32, i32) {
    %c0_i32 = arith.constant 0 : i32
    %c0_i32_0 = arith.constant 0 : i32
    %c0_i32_1 = arith.constant 0 : i32
    return %c0_i32, %c0_i32_0 : i32, i32
  }
  func.func @transform_8(%arg0: i32) -> (i32, i32) {
    %c0_i32 = arith.constant 0 : i32
    %c0_i32_0 = arith.constant 0 : i32
    %c0_i32_1 = arith.constant 0 : i32
    return %c0_i32, %c0_i32_0 : i32, i32
  }
  func.func @transform_9(%arg0: i32) -> (i32, i32) {
    %c0_i32 = arith.constant 0 : i32
    %c0_i32_0 = arith.constant 0 : i32
    return %arg0, %c0_i32 : i32, i32
  }
}

</mosaic_0001>

<llo_original>
// kernel: tpu_custom_call.1
$region0: #{tpu_custom_call.1}
  #allocation0 [shape = 'u32[]', space=smem, size = 0x4, offset = 0x4, fixed_abs, tag = 'smem constant byte address 0x4 - core index']
  #allocation1 [shape = 'u32[144,128]{1,0:T(1,128)}', space=vmem, size = 0x12000, scoped, tag = 'internal scratch']
  %s0 = inlined_call_operand.vmem [shape: bf16[48,32], index: 0, kind: input, shape index: {}]
  %s1 = inlined_call_operand.vmem [shape: bf16[48,32], index: 1, kind: input, shape index: {}]
  %s2 = inlined_call_operand.vmem [shape: f32[48,32], index: 2, kind: input, shape index: {}]
  %s3 = inlined_call_operand.vmem [shape: bf16[32,64], index: 3, kind: input, shape index: {}]
  %s4 = inlined_call_operand.vmem [shape: bf16[32,64], index: 4, kind: input, shape index: {}]
  %s5 = inlined_call_operand.vmem [shape: bf16[32,64], index: 5, kind: input, shape index: {}]
  %s6 = inlined_call_operand.vmem [shape: bf16[64,32], index: 6, kind: input, shape index: {}]
  %s7 = inlined_call_operand.vmem [shape: f32[1,32], index: 7, kind: input, shape index: {}]
  %s8 = inlined_call_operand.vmem [shape: f32[1,32], index: 8, kind: input, shape index: {}]
  %s9 = inlined_call_operand.vmem [shape: f32[48,32], index: 9, kind: output, shape index: {}]
  %s10 = sld [smem:[#allocation0]]
  $region46: #{tpu_custom_call.1} parent=0
    _
  %s12 = ssub.s32 1, %s10
  %s13 = scalar_select 0, %s12, %s10
  // Predicated region
  $region2: #{tpu_custom_call.1} parent=0 // pred_check
    _
  $region3: #{tpu_custom_call.1} parent=0 // pred_check_branch
    %15 = sbr.rel (0) target = $region5
  $region4: #{tpu_custom_call.1} parent=0 // pred_region
    _
  $region5: #{tpu_custom_call.1} parent=0 // pred_fallthru
    _
  // Predicated region
  $region6: #{tpu_custom_call.1} parent=0 // pred_check
    _
  $region7: #{tpu_custom_call.1} parent=0 // pred_check_branch
    %17 = sbr.rel (0) target = $region9
  $region8: #{tpu_custom_call.1} parent=0 // pred_region
    _
  $region9: #{tpu_custom_call.1} parent=0 // pred_fallthru
    _
  // Predicated region
  $region10: #{tpu_custom_call.1} parent=0 // pred_check
    _
  $region11: #{tpu_custom_call.1} parent=0 // pred_check_branch
    %19 = sbr.rel (0) target = $region13
  $region12: #{tpu_custom_call.1} parent=0 // pred_region
    _
  $region13: #{tpu_custom_call.1} parent=0 // pred_fallthru
    _
  // Predicated region
  $region14: #{tpu_custom_call.1} parent=0 // pred_check
    _
  $region15: #{tpu_custom_call.1} parent=0 // pred_check_branch
    %21 = sbr.rel (0) target = $region17
  $region16: #{tpu_custom_call.1} parent=0 // pred_region
    _
  $region17: #{tpu_custom_call.1} parent=0 // pred_fallthru
    _
  // Predicated region
  $region18: #{tpu_custom_call.1} parent=0 // pred_check
    _
  $region19: #{tpu_custom_call.1} parent=0 // pred_check_branch
    %23 = sbr.rel (0) target = $region21
  $region20: #{tpu_custom_call.1} parent=0 // pred_region
    _
  $region21: #{tpu_custom_call.1} parent=0 // pred_fallthru
    _
  // Predicated region
  $region22: #{tpu_custom_call.1} parent=0 // pred_check
    _
  $region23: #{tpu_custom_call.1} parent=0 // pred_check_branch
    %25 = sbr.rel (0) target = $region25
  $region24: #{tpu_custom_call.1} parent=0 // pred_region
    _
  $region25: #{tpu_custom_call.1} parent=0 // pred_fallthru
    _
  // Predicated region
  $region26: #{tpu_custom_call.1} parent=0 // pred_check
    _
  $region27: #{tpu_custom_call.1} parent=0 // pred_check_branch
    %27 = sbr.rel (0) target = $region29
  $region28: #{tpu_custom_call.1} parent=0 // pred_region
    _
  $region29: #{tpu_custom_call.1} parent=0 // pred_fallthru
    _
  // Predicated region
  $region30: #{tpu_custom_call.1} parent=0 // pred_check
    _
  $region31: #{tpu_custom_call.1} parent=0 // pred_check_branch
    %29 = sbr.rel (0) target = $region33
  $region32: #{tpu_custom_call.1} parent=0 // pred_region
    _
  $region33: #{tpu_custom_call.1} parent=0 // pred_fallthru
    _
  // Predicated region
  $region34: #{tpu_custom_call.1} parent=0 // pred_check
    _
  $region35: #{tpu_custom_call.1} parent=0 // pred_check_branch
    %31 = sbr.rel (0) target = $region37
  $region36: #{tpu_custom_call.1} parent=0 // pred_region
    _
  $region37: #{tpu_custom_call.1} parent=0 // pred_fallthru
    _
  %v33 = vld [vmem:[%s2] sm:$0xff]
  %v34 = vld [vmem:[%s2 + $0x8] sm:$0xff]
  %v35 = vld [vmem:[%s2 + $0x10] sm:$0xff]
  %v36 = vld [vmem:[%s2 + $0x18] sm:$0xff]
  %v37 = vld [vmem:[%s2 + $0x20] sm:$0xff]
  %v38 = vld [vmem:[%s2 + $0x28] sm:$0xff]
  %v39 = vld [vmem:[%s0] sm:$0xf]
  %v40 = vld [vmem:[%s0 + $0x4] sm:$0xf]
  %v41 = vld [vmem:[%s0 + $0x8] sm:$0xf]
  %v42 = vld [vmem:[%s0 + $0xc] sm:$0xf]
  %v43 = vld [vmem:[%s0 + $0x10] sm:$0xf]
  %v44 = vld [vmem:[%s0 + $0x14] sm:$0xf]
  %v45 = vld [vmem:[%s3] sm:$0xf]
  %v46 = vld [vmem:[%s3 + $0x4] sm:$0xf]
  %v47 = vld [vmem:[%s3 + $0x8] sm:$0xf]
  %v48 = vld [vmem:[%s3 + $0xc] sm:$0xf]
  %v49 = vld [vmem:[%s1] sm:$0xf]
  %v50 = vld [vmem:[%s1 + $0x4] sm:$0xf]
  %v51 = vld [vmem:[%s1 + $0x8] sm:$0xf]
  %v52 = vld [vmem:[%s1 + $0xc] sm:$0xf]
  %v53 = vld [vmem:[%s1 + $0x10] sm:$0xf]
  %v54 = vld [vmem:[%s1 + $0x14] sm:$0xf]
  %v55 = vld [vmem:[%s4] sm:$0xf]
  %v56 = vld [vmem:[%s4 + $0x4] sm:$0xf]
  %v57 = vld [vmem:[%s4 + $0x8] sm:$0xf]
  %v58 = vld [vmem:[%s4 + $0xc] sm:$0xf]
  %v65 = vunpack.c.l.b16 %v49
  %v66 = vunpack.c.l.b16 %v50
  %v67 = vunpack.c.l.b16 %v51
  %v68 = vunpack.c.l.b16 %v52
  %v69 = vunpack.c.l.b16 %v53
  %v70 = vunpack.c.l.b16 %v54
  %v71 = vpack.c.b16 %v66, %v65
  %v72 = vpack.c.b16 %v68, %v67
  %v73 = vpack.c.b16 %v70, %v69
  %v78 = vunpack.c.l.b16 %v55
  %v79 = vunpack.c.l.b16 %v56
  %v80 = vunpack.c.l.b16 %v57
  %v81 = vunpack.c.l.b16 %v58
  %v82 = vpack.c.b16 %v79, %v78
  %v83 = vpack.c.b16 %v81, %v80
  %vm86 = vcmask 261120
  %v88 = vsel %vm86, %v71, 0
  %v91 = vsel %vm86, %v72, 0
  %v94 = vsel %vm86, %v73, 0
  %96 = vmatprep.subr.bf16.mxu0 0
  %97 = vmatpush1.bf16.msra.mxu0 0
  %98 = vmatprep.subr.bf16.mxu0 0
  %99 = vmatpush1.bf16.msra.mxu0 0
  %100 = vmatprep.subr.bf16.mxu0 0
  %101 = vmatpush1.bf16.msra.mxu0 0
  %102 = vmatprep.subr.bf16.mxu0 0
  %103 = vmatpush1.bf16.msra.mxu0 0
  %104 = vmatprep.subr.bf16.mxu0 0
  %105 = vmatpush1.bf16.msra.mxu0 0
  %106 = vmatprep.subr.bf16.mxu0 0
  %107 = vmatpush1.bf16.msra.mxu0 0
  %108 = vmatprep.subr.bf16.mxu0 0
  %109 = vmatpush1.bf16.msra.mxu0 %v83
  %110 = vmatprep.subr.bf16.mxu0 0
  %111 = vmatpush1.bf16.msra.mxu0 %v82
  %112 = vmatprep.subr.bf16.mxu0 0
  %113 = vmatpush2.bf16.msra.mxu0 0
  %114 = vmatprep.subr.bf16.mxu0 0
  %115 = vmatpush2.bf16.msra.mxu0 0
  %116 = vmatprep.subr.bf16.mxu0 0
  %117 = vmatpush2.bf16.msra.mxu0 0
  %118 = vmatprep.subr.bf16.mxu0 0
  %119 = vmatpush2.bf16.msra.mxu0 0
  %120 = vmatprep.subr.bf16.mxu0 0
  %121 = vmatpush2.bf16.msra.mxu0 0
  %122 = vmatprep.subr.bf16.mxu0 0
  %123 = vmatpush2.bf16.msra.mxu0 0
  %124 = vmatprep.subr.bf16.mxu0 0
  %125 = vmatpush2.bf16.msra.mxu0 0
  %126 = vmatprep.subr.bf16.mxu0 0
  %127 = vmatpush2.bf16.msra.mxu0 0
  %128 = vmatprep.mubr.bf16.mxu0 0
  %129 = vmatmul.mubr.bf16.gmra.mxu0 %v88
  %v130 = vpop.f32.mrf.mxu0
  %v131 = vadd.f32 0.0, %v130
  %v132 = vpop.f32.mrf.mxu0
  %v133 = vpop.f32.mrf.mxu0
  %v134 = vadd.f32 0.0, %v133
  %v135 = vpop.f32.mrf.mxu0
  %136 = vmatprep.mubr.bf16.mxu0 0
  %137 = vmatmul.mubr.bf16.gmra.mxu0 %v91
  %v138 = vpop.f32.mrf.mxu0
  %v139 = vadd.f32 0.0, %v138
  %v140 = vpop.f32.mrf.mxu0
  %v141 = vpop.f32.mrf.mxu0
  %v142 = vadd.f32 0.0, %v141
  %v143 = vpop.f32.mrf.mxu0
  %144 = vmatprep.mubr.bf16.mxu0 0
  %145 = vmatmul.mubr.bf16.gmra.mxu0 %v94
  %v146 = vpop.f32.mrf.mxu0
  %v147 = vadd.f32 0.0, %v146
  %v148 = vpop.f32.mrf.mxu0
  %v149 = vpop.f32.mrf.mxu0
  %v150 = vadd.f32 0.0, %v149
  %v151 = vpop.f32.mrf.mxu0
  %152 = vdwg.mxu0
  %v159 = vunpack.c.l.b16 %v39
  %v160 = vunpack.c.l.b16 %v40
  %v161 = vunpack.c.l.b16 %v41
  %v162 = vunpack.c.l.b16 %v42
  %v163 = vunpack.c.l.b16 %v43
  %v164 = vunpack.c.l.b16 %v44
  %v165 = vpack.c.b16 %v160, %v159
  %v166 = vpack.c.b16 %v162, %v161
  %v167 = vpack.c.b16 %v164, %v163
  %v172 = vunpack.c.l.b16 %v45
  %v173 = vunpack.c.l.b16 %v46
  %v174 = vunpack.c.l.b16 %v47
  %v175 = vunpack.c.l.b16 %v48
  %v176 = vpack.c.b16 %v173, %v172
  %v177 = vpack.c.b16 %v175, %v174
  %v181 = vsel %vm86, %v165, 0
  %v184 = vsel %vm86, %v166, 0
  %v187 = vsel %vm86, %v167, 0
  %189 = vmatprep.subr.bf16.mxu0 0
  %190 = vmatpush1.bf16.msra.mxu0 0
  %191 = vmatprep.subr.bf16.mxu0 0
  %192 = vmatpush1.bf16.msra.mxu0 0
  %193 = vmatprep.subr.bf16.mxu0 0
  %194 = vmatpush1.bf16.msra.mxu0 0
  %195 = vmatprep.subr.bf16.mxu0 0
  %196 = vmatpush1.bf16.msra.mxu0 0
  %197 = vmatprep.subr.bf16.mxu0 0
  %198 = vmatpush1.bf16.msra.mxu0 0
  %199 = vmatprep.subr.bf16.mxu0 0
  %200 = vmatpush1.bf16.msra.mxu0 0
  %201 = vmatprep.subr.bf16.mxu0 0
  %202 = vmatpush1.bf16.msra.mxu0 %v177
  %203 = vmatprep.subr.bf16.mxu0 0
  %204 = vmatpush1.bf16.msra.mxu0 %v176
  %205 = vmatprep.subr.bf16.mxu0 0
  %206 = vmatpush2.bf16.msra.mxu0 0
  %207 = vmatprep.subr.bf16.mxu0 0
  %208 = vmatpush2.bf16.msra.mxu0 0
  %209 = vmatprep.subr.bf16.mxu0 0
  %210 = vmatpush2.bf16.msra.mxu0 0
  %211 = vmatprep.subr.bf16.mxu0 0
  %212 = vmatpush2.bf16.msra.mxu0 0
  %213 = vmatprep.subr.bf16.mxu0 0
  %214 = vmatpush2.bf16.msra.mxu0 0
  %215 = vmatprep.subr.bf16.mxu0 0
  %216 = vmatpush2.bf16.msra.mxu0 0
  %217 = vmatprep.subr.bf16.mxu0 0
  %218 = vmatpush2.bf16.msra.mxu0 0
  %219 = vmatprep.subr.bf16.mxu0 0
  %220 = vmatpush2.bf16.msra.mxu0 0
  %221 = vmatprep.mubr.bf16.mxu0 0
  %222 = vmatmul.mubr.bf16.gmra.mxu0 %v181
  %v223 = vpop.f32.mrf.mxu0
  %v224 = vadd.f32 %v131, %v223
  %v225 = vpop.f32.mrf.mxu0
  %v226 = vpop.f32.mrf.mxu0
  %v227 = vadd.f32 %v134, %v226
  %v228 = vpop.f32.mrf.mxu0
  %229 = vmatprep.mubr.bf16.mxu0 0
  %230 = vmatmul.mubr.bf16.gmra.mxu0 %v184
  %v231 = vpop.f32.mrf.mxu0
  %v232 = vadd.f32 %v139, %v231
  %v233 = vpop.f32.mrf.mxu0
  %v234 = vpop.f32.mrf.mxu0
  %v235 = vadd.f32 %v142, %v234
  %v236 = vpop.f32.mrf.mxu0
  %237 = vmatprep.mubr.bf16.mxu0 0
  %238 = vmatmul.mubr.bf16.gmra.mxu0 %v187
  %v239 = vpop.f32.mrf.mxu0
  %v240 = vadd.f32 %v147, %v239
  %v241 = vpop.f32.mrf.mxu0
  %v242 = vpop.f32.mrf.mxu0
  %v243 = vadd.f32 %v150, %v242
  %v244 = vpop.f32.mrf.mxu0
  %245 = vdwg.mxu0
  %v246 = vpack.c.bf16 %v34, %v33
  %v247 = vpack.c.bf16 %v36, %v35
  %v248 = vpack.c.bf16 %v38, %v37
  %v249 = vld [vmem:[%s5] sm:$0xf]
  %v250 = vld [vmem:[%s5 + $0x4] sm:$0xf]
  %v251 = vld [vmem:[%s5 + $0x8] sm:$0xf]
  %v252 = vld [vmem:[%s5 + $0xc] sm:$0xf]
  %v257 = vunpack.c.l.b16 %v249
  %v258 = vunpack.c.l.b16 %v250
  %v259 = vunpack.c.l.b16 %v251
  %v260 = vunpack.c.l.b16 %v252
  %v261 = vpack.c.b16 %v258, %v257
  %v262 = vpack.c.b16 %v260, %v259
  %v266 = vsel %vm86, %v246, 0
  %v269 = vsel %vm86, %v247, 0
  %v272 = vsel %vm86, %v248, 0
  %274 = vmatprep.subr.bf16.mxu0 0
  %275 = vmatpush1.bf16.msra.mxu0 0
  %276 = vmatprep.subr.bf16.mxu0 0
  %277 = vmatpush1.bf16.msra.mxu0 0
  %278 = vmatprep.subr.bf16.mxu0 0
  %279 = vmatpush1.bf16.msra.mxu0 0
  %280 = vmatprep.subr.bf16.mxu0 0
  %281 = vmatpush1.bf16.msra.mxu0 0
  %282 = vmatprep.subr.bf16.mxu0 0
  %283 = vmatpush1.bf16.msra.mxu0 0
  %284 = vmatprep.subr.bf16.mxu0 0
  %285 = vmatpush1.bf16.msra.mxu0 0
  %286 = vmatprep.subr.bf16.mxu0 0
  %287 = vmatpush1.bf16.msra.mxu0 %v262
  %288 = vmatprep.subr.bf16.mxu0 0
  %289 = vmatpush1.bf16.msra.mxu0 %v261
  %290 = vmatprep.subr.bf16.mxu0 0
  %291 = vmatpush2.bf16.msra.mxu0 0
  %292 = vmatprep.subr.bf16.mxu0 0
  %293 = vmatpush2.bf16.msra.mxu0 0
  %294 = vmatprep.subr.bf16.mxu0 0
  %295 = vmatpush2.bf16.msra.mxu0 0
  %296 = vmatprep.subr.bf16.mxu0 0
  %297 = vmatpush2.bf16.msra.mxu0 0
  %298 = vmatprep.subr.bf16.mxu0 0
  %299 = vmatpush2.bf16.msra.mxu0 0
  %300 = vmatprep.subr.bf16.mxu0 0
  %301 = vmatpush2.bf16.msra.mxu0 0
  %302 = vmatprep.subr.bf16.mxu0 0
  %303 = vmatpush2.bf16.msra.mxu0 0
  %304 = vmatprep.subr.bf16.mxu0 0
  %305 = vmatpush2.bf16.msra.mxu0 0
  %306 = vmatprep.mubr.bf16.mxu0 0
  %307 = vmatmul.mubr.bf16.gmra.mxu0 %v266
  %v308 = vpop.f32.mrf.mxu0
  %v309 = vadd.f32 0.0, %v308
  %v310 = vpop.f32.mrf.mxu0
  %v311 = vpop.f32.mrf.mxu0
  %v312 = vadd.f32 0.0, %v311
  %v313 = vpop.f32.mrf.mxu0
  %314 = vmatprep.mubr.bf16.mxu0 0
  %315 = vmatmul.mubr.bf16.gmra.mxu0 %v269
  %v316 = vpop.f32.mrf.mxu0
  %v317 = vadd.f32 0.0, %v316
  %v318 = vpop.f32.mrf.mxu0
  %v319 = vpop.f32.mrf.mxu0
  %v320 = vadd.f32 0.0, %v319
  %v321 = vpop.f32.mrf.mxu0
  %322 = vmatprep.mubr.bf16.mxu0 0
  %323 = vmatmul.mubr.bf16.gmra.mxu0 %v272
  %v324 = vpop.f32.mrf.mxu0
  %v325 = vadd.f32 0.0, %v324
  %v326 = vpop.f32.mrf.mxu0
  %v327 = vpop.f32.mrf.mxu0
  %v328 = vadd.f32 0.0, %v327
  %v329 = vpop.f32.mrf.mxu0
  %330 = vdwg.mxu0
  %v331 = vadd.f32 %v224, %v309
  %v332 = vadd.f32 %v227, %v312
  %v333 = vadd.f32 %v232, %v317
  %v334 = vadd.f32 %v235, %v320
  %v335 = vadd.f32 %v240, %v325
  %v336 = vadd.f32 %v243, %v328
  %v337 = vxor.u32 %v331, 2147483648
  %v338 = vxor.u32 %v332, 2147483648
  %v339 = vxor.u32 %v333, 2147483648
  %v340 = vxor.u32 %v334, 2147483648
  %v341 = vxor.u32 %v335, 2147483648
  %v342 = vxor.u32 %v336, 2147483648
  %v343 = vmul.f32 %v337, 1.442695
  %v344 = vpow.pop %v343
  %v345 = vmul.f32 %v338, 1.442695
  %v346 = vpow.pop %v345
  %v347 = vmul.f32 %v339, 1.442695
  %v348 = vpow.pop %v347
  %v349 = vmul.f32 %v340, 1.442695
  %v350 = vpow.pop %v349
  %v351 = vmul.f32 %v341, 1.442695
  %v352 = vpow.pop %v351
  %v353 = vmul.f32 %v342, 1.442695
  %v354 = vpow.pop %v353
  %v355 = vadd.f32 %v344, 1.0
  %v356 = vadd.f32 %v346, 1.0
  %v357 = vadd.f32 %v348, 1.0
  %v358 = vadd.f32 %v350, 1.0
  %v359 = vadd.f32 %v352, 1.0
  %v360 = vadd.f32 %v354, 1.0
  %v361 = vrcp.pop %v355
  %v362 = vmul.f32 1.0, %v361
  %v363 = vrcp.pop %v356
  %v364 = vmul.f32 1.0, %v363
  %v365 = vrcp.pop %v357
  %v366 = vmul.f32 1.0, %v365
  %v367 = vrcp.pop %v358
  %v368 = vmul.f32 1.0, %v367
  %v369 = vrcp.pop %v359
  %v370 = vmul.f32 1.0, %v369
  %v371 = vrcp.pop %v360
  %v372 = vmul.f32 1.0, %v371
  %v373 = vmul.f32 %v331, %v362
  %v374 = vmul.f32 %v332, %v364
  %v375 = vmul.f32 %v333, %v366
  %v376 = vmul.f32 %v334, %v368
  %v377 = vmul.f32 %v335, %v370
  %v378 = vmul.f32 %v336, %v372
  %v379 = vpack.c.bf16 %v374, %v373
  %v380 = vpack.c.bf16 %v376, %v375
  %v381 = vpack.c.bf16 %v378, %v377
  %v382 = vld [vmem:[%s6] sm:$0xf]
  %v383 = vld [vmem:[%s6 + $0x4] sm:$0xf]
  %v384 = vld [vmem:[%s6 + $0x8] sm:$0xf]
  %v385 = vld [vmem:[%s6 + $0xc] sm:$0xf]
  %v386 = vld [vmem:[%s6 + $0x10] sm:$0xf]
  %v387 = vld [vmem:[%s6 + $0x14] sm:$0xf]
  %v388 = vld [vmem:[%s6 + $0x18] sm:$0xf]
  %v389 = vld [vmem:[%s6 + $0x1c] sm:$0xf]
  %v398 = vunpack.c.l.b16 %v382
  %v399 = vunpack.c.l.b16 %v383
  %v400 = vunpack.c.l.b16 %v384
  %v401 = vunpack.c.l.b16 %v385
  %v402 = vunpack.c.l.b16 %v386
  %v403 = vunpack.c.l.b16 %v387
  %v404 = vunpack.c.l.b16 %v388
  %v405 = vunpack.c.l.b16 %v389
  %v406 = vpack.c.b16 %v399, %v398
  %v407 = vpack.c.b16 %v401, %v400
  %v408 = vpack.c.b16 %v403, %v402
  %v409 = vpack.c.b16 %v405, %v404
  %vm414 = vcmask 523264
  %v416 = vsel %vm414, %v379, 0
  %v419 = vsel %vm414, %v380, 0
  %v422 = vsel %vm414, %v381, 0
  %424 = vmatprep.subr.bf16.mxu0 0
  %425 = vmatpush1.bf16.msra.mxu0 0
  %426 = vmatprep.subr.bf16.mxu0 0
  %427 = vmatpush1.bf16.msra.mxu0 0
  %428 = vmatprep.subr.bf16.mxu0 0
  %429 = vmatpush1.bf16.msra.mxu0 0
  %430 = vmatprep.subr.bf16.mxu0 0
  %431 = vmatpush1.bf16.msra.mxu0 0
  %432 = vmatprep.subr.bf16.mxu0 0
  %433 = vmatpush1.bf16.msra.mxu0 %v409
  %434 = vmatprep.subr.bf16.mxu0 0
  %435 = vmatpush1.bf16.msra.mxu0 %v408
  %436 = vmatprep.subr.bf16.mxu0 0
  %437 = vmatpush1.bf16.msra.mxu0 %v407
  %438 = vmatprep.subr.bf16.mxu0 0
  %439 = vmatpush1.bf16.msra.mxu0 %v406
  %440 = vmatprep.subr.bf16.mxu0 0
  %441 = vmatpush2.bf16.msra.mxu0 0
  %442 = vmatprep.subr.bf16.mxu0 0
  %443 = vmatpush2.bf16.msra.mxu0 0
  %444 = vmatprep.subr.bf16.mxu0 0
  %445 = vmatpush2.bf16.msra.mxu0 0
  %446 = vmatprep.subr.bf16.mxu0 0
  %447 = vmatpush2.bf16.msra.mxu0 0
  %448 = vmatprep.subr.bf16.mxu0 0
  %449 = vmatpush2.bf16.msra.mxu0 0
  %450 = vmatprep.subr.bf16.mxu0 0
  %451 = vmatpush2.bf16.msra.mxu0 0
  %452 = vmatprep.subr.bf16.mxu0 0
  %453 = vmatpush2.bf16.msra.mxu0 0
  %454 = vmatprep.subr.bf16.mxu0 0
  %455 = vmatpush2.bf16.msra.mxu0 0
  %456 = vmatprep.mubr.bf16.mxu0 0
  %457 = vmatmul.mubr.bf16.gmra.mxu0 %v416
  %v458 = vpop.f32.mrf.mxu0
  %v459 = vadd.f32 0.0, %v458
  %v460 = vpop.f32.mrf.mxu0
  %v461 = vpop.f32.mrf.mxu0
  %v462 = vadd.f32 0.0, %v461
  %v463 = vpop.f32.mrf.mxu0
  %464 = vmatprep.mubr.bf16.mxu0 0
  %465 = vmatmul.mubr.bf16.gmra.mxu0 %v419
  %v466 = vpop.f32.mrf.mxu0
  %v467 = vadd.f32 0.0, %v466
  %v468 = vpop.f32.mrf.mxu0
  %v469 = vpop.f32.mrf.mxu0
  %v470 = vadd.f32 0.0, %v469
  %v471 = vpop.f32.mrf.mxu0
  %472 = vmatprep.mubr.bf16.mxu0 0
  %473 = vmatmul.mubr.bf16.gmra.mxu0 %v422
  %v474 = vpop.f32.mrf.mxu0
  %v475 = vadd.f32 0.0, %v474
  %v476 = vpop.f32.mrf.mxu0
  %v477 = vpop.f32.mrf.mxu0
  %v478 = vadd.f32 0.0, %v477
  %v479 = vpop.f32.mrf.mxu0
  %480 = vdwg.mxu0
  %v481 = vld [vmem:[%s7] sm:$0x1]
  %v482 = vld [vmem:[%s8] sm:$0x1]
  %v483 = vsel %vm86, %v459, 0.0
  %484 = vadd.xlane.f32.xlu0 %v483
  %v485 = vpop.xlane.xlu0 %484
  %v486 = vsel %vm86, %v462, 0.0
  %487 = vadd.xlane.f32.xlu0 %v486
  %v488 = vpop.xlane.xlu0 %487
  %v489 = vsel %vm86, %v467, 0.0
  %490 = vadd.xlane.f32.xlu0 %v489
  %v491 = vpop.xlane.xlu0 %490
  %v492 = vsel %vm86, %v470, 0.0
  %493 = vadd.xlane.f32.xlu0 %v492
  %v494 = vpop.xlane.xlu0 %493
  %v495 = vsel %vm86, %v475, 0.0
  %496 = vadd.xlane.f32.xlu0 %v495
  %v497 = vpop.xlane.xlu0 %496
  %v498 = vsel %vm86, %v478, 0.0
  %499 = vadd.xlane.f32.xlu0 %v498
  %v500 = vpop.xlane.xlu0 %499
  %v501 = vrcp.pop 32.0
  %v502 = vmul.f32 %v485, %v501
  %v503 = vmul.f32 %v488, %v501
  %v504 = vmul.f32 %v491, %v501
  %v505 = vmul.f32 %v494, %v501
  %v506 = vmul.f32 %v497, %v501
  %v507 = vmul.f32 %v500, %v501
  %v508 = vsub.f32 %v459, %v502
  %v509 = vsub.f32 %v462, %v503
  %v510 = vsub.f32 %v467, %v504
  %v511 = vsub.f32 %v470, %v505
  %v512 = vsub.f32 %v475, %v506
  %v513 = vsub.f32 %v478, %v507
  %v514 = vmul.f32 %v508, %v508
  %v515 = vmul.f32 %v509, %v509
  %v516 = vmul.f32 %v510, %v510
  %v517 = vmul.f32 %v511, %v511
  %v518 = vmul.f32 %v512, %v512
  %v519 = vmul.f32 %v513, %v513
  %v520 = vsel %vm86, %v514, 0.0
  %521 = vadd.xlane.f32.xlu0 %v520
  %v522 = vpop.xlane.xlu0 %521
  %v523 = vsel %vm86, %v515, 0.0
  %524 = vadd.xlane.f32.xlu0 %v523
  %v525 = vpop.xlane.xlu0 %524
  %v526 = vsel %vm86, %v516, 0.0
  %527 = vadd.xlane.f32.xlu0 %v526
  %v528 = vpop.xlane.xlu0 %527
  %v529 = vsel %vm86, %v517, 0.0
  %530 = vadd.xlane.f32.xlu0 %v529
  %v531 = vpop.xlane.xlu0 %530
  %v532 = vsel %vm86, %v518, 0.0
  %533 = vadd.xlane.f32.xlu0 %v532
  %v534 = vpop.xlane.xlu0 %533
  %v535 = vsel %vm86, %v519, 0.0
  %536 = vadd.xlane.f32.xlu0 %v535
  %v537 = vpop.xlane.xlu0 %536
  %v538 = vmul.f32 %v522, %v501
  %v539 = vmul.f32 %v525, %v501
  %v540 = vmul.f32 %v528, %v501
  %v541 = vmul.f32 %v531, %v501
  %v542 = vmul.f32 %v534, %v501
  %v543 = vmul.f32 %v537, %v501
  %v544 = vadd.f32 %v538, 1e-05
  %v545 = vadd.f32 %v539, 1e-05
  %v546 = vadd.f32 %v540, 1e-05
  %v547 = vadd.f32 %v541, 1e-05
  %v548 = vadd.f32 %v542, 1e-05
  %v549 = vadd.f32 %v543, 1e-05
  %v550 = vrsqrt.pop %v544
  %v551 = vrsqrt.pop %v545
  %v552 = vrsqrt.pop %v546
  %v553 = vrsqrt.pop %v547
  %v554 = vrsqrt.pop %v548
  %v555 = vrsqrt.pop %v549
  %v556 = vmul.f32 %v508, %v550
  %v557 = vmul.f32 %v509, %v551
  %v558 = vmul.f32 %v510, %v552
  %v559 = vmul.f32 %v511, %v553
  %v560 = vmul.f32 %v512, %v554
  %v561 = vmul.f32 %v513, %v555
  %v563 = vlaneseq
  %v564 = vshrl.u32 %v563, 7
  %v565 = vsub.s32 0, %v564
  %v566 = vrot.slane %v481, %v565
  %v568 = vmul.f32 %v556, %v566
  %v569 = vmul.f32 %v557, %v566
  %v570 = vmul.f32 %v558, %v566
  %v571 = vmul.f32 %v559, %v566
  %v572 = vmul.f32 %v560, %v566
  %v573 = vmul.f32 %v561, %v566
  %v575 = vlaneseq
  %v576 = vshrl.u32 %v575, 7
  %v577 = vsub.s32 0, %v576
  %v578 = vrot.slane %v482, %v577
  %v580 = vadd.f32 %v568, %v578
  %v581 = vadd.f32 %v569, %v578
  %v582 = vadd.f32 %v570, %v578
  %v583 = vadd.f32 %v571, %v578
  %v584 = vadd.f32 %v572, %v578
  %v585 = vadd.f32 %v573, %v578
  %v586 = vadd.f32 %v580, %v33
  %v587 = vadd.f32 %v581, %v34
  %v588 = vadd.f32 %v582, %v35
  %v589 = vadd.f32 %v583, %v36
  %v590 = vadd.f32 %v584, %v37
  %v591 = vadd.f32 %v585, %v38
  %592 = vst.msk [vmem:[%s9] sm:$0xff] %vm86, %v586
  %593 = vst.msk [vmem:[%s9 + $0x8] sm:$0xff] %vm86, %v587
  %594 = vst.msk [vmem:[%s9 + $0x10] sm:$0xff] %vm86, %v588
  %595 = vst.msk [vmem:[%s9 + $0x18] sm:$0xff] %vm86, %v589
  %596 = vst.msk [vmem:[%s9 + $0x20] sm:$0xff] %vm86, %v590
  %597 = vst.msk [vmem:[%s9 + $0x28] sm:$0xff] %vm86, %v591
  // Predicated region
  $region38: #{tpu_custom_call.1} parent=0 // pred_check
    _
  $region39: #{tpu_custom_call.1} parent=0 // pred_check_branch
    %599 = sbr.rel (0) target = $region41
  $region40: #{tpu_custom_call.1} parent=0 // pred_region
    _
  $region41: #{tpu_custom_call.1} parent=0 // pred_fallthru
    _
  // Predicated region
  $region42: #{tpu_custom_call.1} parent=0 // pred_check
    _
  $region43: #{tpu_custom_call.1} parent=0 // pred_check_branch
    %601 = sbr.rel (0) target = $region45
  $region44: #{tpu_custom_call.1} parent=0 // pred_region
    _
  $region45: #{tpu_custom_call.1} parent=0 // pred_fallthru
    _

</llo_original>
